<compile_context>
chip_gen: v7x
topology: tpu7x:2x2x1
jax: 0.10.0
libtpu: 0.0.40
codegen_flags: <defaults>
</compile_context>

<pallas_src>
import math

import jax
import jax.numpy as jnp
from jax.experimental import pallas as pl
from jax.experimental.pallas import tpu as pltpu


# ----------------------------------------------------------------------------
# Kernels
# ----------------------------------------------------------------------------

def _proj_logsoftmax_kernel(x_ref, wt_ref, b_ref, out_ref):
    # x_ref:  (TN, D)  bf16 (compute dtype)
    # wt_ref: (D,  Vp) bf16, VMEM-resident across the grid
    # b_ref:  (1,  Vp) f32
    # out_ref:(TN, Vp) out dtype
    logits = jnp.dot(x_ref[...], wt_ref[...],
                     preferred_element_type=jnp.float32)
    logits = logits + b_ref[...]                        # broadcast (1, Vp)

    # numerically stable log_softmax over the vocab (last) axis
    m = jnp.max(logits, axis=-1, keepdims=True)         # (TN, 1)
    z = logits - m
    lse = jnp.log(jnp.sum(jnp.exp(z), axis=-1, keepdims=True))
    out_ref[...] = (z - lse).astype(out_ref.dtype)


def _logits_lse_kernel(x_ref, wt_ref, b_ref, logits_ref, lse_ref, m_sc, l_sc):
    # Vocab-tiled pass 1: raw logits per (token, vocab) tile + online logsumexp.
    # grid = (token_tiles, vocab_tiles); vocab is the last ("arbitrary") axis.
    j = pl.program_id(1)

    @pl.when(j == 0)
    def _():
        m_sc[...] = jnp.full(m_sc.shape, -jnp.inf, m_sc.dtype)
        l_sc[...] = jnp.zeros(l_sc.shape, l_sc.dtype)

    logits = jnp.dot(x_ref[...], wt_ref[...],
                     preferred_element_type=jnp.float32)
    logits = logits + b_ref[...]
    logits_ref[...] = logits

    m_prev = m_sc[...]
    m_new = jnp.maximum(m_prev, jnp.max(logits, axis=-1, keepdims=True))
    l_sc[...] = (l_sc[...] * jnp.exp(m_prev - m_new)
                 + jnp.sum(jnp.exp(logits - m_new), axis=-1, keepdims=True))
    m_sc[...] = m_new

    @pl.when(j == pl.num_programs(1) - 1)
    def _():
        lse_ref[...] = m_sc[...] + jnp.log(l_sc[...])


def _sub_lse_kernel(logits_ref, lse_ref, out_ref):
    # Vocab-tiled pass 2 (finalize): out = logits - lse.
    out_ref[...] = (logits_ref[...] - lse_ref[...]).astype(out_ref.dtype)


# ----------------------------------------------------------------------------
# Helpers
# ----------------------------------------------------------------------------

def _round_up(a, b):
    return (a + b - 1) // b * b


def _vmem_budget_bytes():
    # Generation-aware VMEM budget with headroom for Mosaic internal scratch.
    cap = 64 * 1024 * 1024  # conservative fallback (v7x per-core VMEM)
    try:
        cap = int(pltpu.get_tpu_info().vmem_capacity_bytes)
    except Exception:
        pass
    # ~80% of physical: ~100 MiB on 128-MiB parts, ~51 MiB on v7x.
    return max(16 * 1024 * 1024, int(cap * 0.8))


# ----------------------------------------------------------------------------
# Wrappers
# ----------------------------------------------------------------------------

def _resident_call(x2, wt, b2, Np, D, Vp, tile, out_dtype, vmem_budget):
    grid = (Np // tile,)

    def run(single_buffer_resident):
        res_kw = {}
        if single_buffer_resident and hasattr(pl, "Buffered"):
            # Constant index_map -> no double buffering needed for the weight.
            res_kw = dict(pipeline_mode=pl.Buffered(1))
        return pl.pallas_call(
            _proj_logsoftmax_kernel,
            out_shape=jax.ShapeDtypeStruct((Np, Vp), out_dtype),
            grid_spec=pltpu.PrefetchScalarGridSpec(
                num_scalar_prefetch=0,
                grid=grid,
                in_specs=[
                    pl.BlockSpec((tile, D), lambda i: (i, 0)),      # x tile
                    pl.BlockSpec((D, Vp), lambda i: (0, 0), **res_kw),  # W^T
                    pl.BlockSpec((1, Vp), lambda i: (0, 0), **res_kw),  # bias
                ],
                out_specs=pl.BlockSpec((tile, Vp), lambda i: (i, 0)),
            ),
            compiler_params=pltpu.CompilerParams(
                dimension_semantics=("parallel",),
                vmem_limit_bytes=vmem_budget,
            ),
        )(x2, wt, b2)

    try:
        return run(True)
    except Exception:
        # Older/different JAX builds may reject Buffered(1); retry default.
        return run(False)


def _vocab_tiled_call(x2, wt, b2, Np, D, Vp, tile, vocab_tile, out_dtype,
                      vmem_budget):
    vtile = _round_up(min(int(vocab_tile), Vp), 128)
    Vpp = _round_up(Vp, vtile)
    if Vpp != Vp:
        wt = jnp.pad(wt, ((0, 0), (0, Vpp - Vp)))
        b2 = jnp.pad(b2, ((0, 0), (0, Vpp - Vp)), constant_values=-1e30)
    nt = Np // tile
    nv = Vpp // vtile

    logits, lse = pl.pallas_call(
        _logits_lse_kernel,
        out_shape=(jax.ShapeDtypeStruct((Np, Vpp), jnp.float32),
                   jax.ShapeDtypeStruct((Np, 1), jnp.float32)),
        grid_spec=pltpu.PrefetchScalarGridSpec(
            num_scalar_prefetch=0,
            grid=(nt, nv),
            in_specs=[
                pl.BlockSpec((tile, D), lambda i, j: (i, 0)),
                pl.BlockSpec((D, vtile), lambda i, j: (0, j)),
                pl.BlockSpec((1, vtile), lambda i, j: (0, j)),
            ],
            out_specs=[
                pl.BlockSpec((tile, vtile), lambda i, j: (i, j)),
                pl.BlockSpec((tile, 1), lambda i, j: (i, 0)),
            ],
            scratch_shapes=[pltpu.VMEM((tile, 1), jnp.float32),
                            pltpu.VMEM((tile, 1), jnp.float32)],
        ),
        compiler_params=pltpu.CompilerParams(
            dimension_semantics=("parallel", "arbitrary"),
            vmem_limit_bytes=vmem_budget,
        ),
    )(x2, wt, b2)

    out = pl.pallas_call(
        _sub_lse_kernel,
        out_shape=jax.ShapeDtypeStruct((Np, Vpp), out_dtype),
        grid_spec=pltpu.PrefetchScalarGridSpec(
            num_scalar_prefetch=0,
            grid=(nt, nv),
            in_specs=[
                pl.BlockSpec((tile, vtile), lambda i, j: (i, j)),
                pl.BlockSpec((tile, 1), lambda i, j: (i, 0)),
            ],
            out_specs=pl.BlockSpec((tile, vtile), lambda i, j: (i, j)),
        ),
        compiler_params=pltpu.CompilerParams(
            dimension_semantics=("parallel", "parallel"),
            vmem_limit_bytes=vmem_budget,
        ),
    )(logits, lse)
    return out


def projection_layer_wt(x, weight_t, bias, *, out_dtype=jnp.float32,
                        compute_dtype=jnp.bfloat16, token_tile=None,
                        vocab_tile=1024, force_vocab_tiled=False):
    """x: [B, S, D]; weight_t: [D, V] (pre-transposed W^T); bias: [V].

    Returns log_softmax(x @ weight_t + bias, axis=-1) of shape [B, S, V]
    in `out_dtype`. The matmul runs in `compute_dtype` with f32 accumulation.
    """
    B, S, D = x.shape
    D2, V = weight_t.shape
    assert D == D2, "weight_t first dim must match x last dim"
    assert bias.shape == (V,)

    N = B * S
    budget = _vmem_budget_bytes()

    # Lane-dense vocab axis: pad V up to a multiple of 128.
    Vp = _round_up(V, 128)

    # Generation-aware default token tile; keep sublane-aligned (mult of 8).
    if token_tile is None:
        token_tile = 512 if budget >= 80 * 1024 * 1024 else 256
    tile = min(int(token_tile), _round_up(N, 8))
    tile = _round_up(tile, 8)
    Np = _round_up(N, tile)

    cdt = jnp.dtype(compute_dtype)
    csz = cdt.itemsize
    osz = jnp.dtype(out_dtype).itemsize

    x2 = x.reshape(N, D).astype(cdt)
    if Np != N:
        x2 = jnp.pad(x2, ((0, Np - N), (0, 0)))

    wt = weight_t.astype(cdt)                           # [D, V] compute dtype
    b2 = bias.astype(jnp.float32).reshape(1, V)
    if Vp != V:
        wt = jnp.pad(wt, ((0, 0), (0, Vp - V)))
        # -1e30 pad -> exp() == 0 -> logsumexp unchanged by padding columns.
        b2 = jnp.pad(b2, ((0, 0), (0, Vp - V)), constant_values=-1e30)

    # Resident-weight path fits? (conservative: worst-case double buffering
    # of the weight in case the Buffered(1) request is not honored.)
    resident_bytes = 2 * D * Vp * csz
    per_step_bytes = (2 * tile * D * csz          # x tiles (double-buffered)
                      + 2 * tile * Vp * osz       # output tiles
                      + tile * Vp * 4             # f32 logits temporary
                      + 2 * Vp * 4)               # bias
    use_resident = (not force_vocab_tiled) and (
        resident_bytes + per_step_bytes < budget)

    if use_resident:
        out = _resident_call(x2, wt, b2, Np, D, Vp, tile, out_dtype, budget)
    else:
        out = _vocab_tiled_call(x2, wt, b2, Np, D, Vp, tile, vocab_tile,
                                out_dtype, budget)

    return out[:N, :V].reshape(B, S, V)


def projection_layer(x, weight, bias, **kwargs):
    """Convenience wrapper taking the nn.Linear layout weight [V, D].

    Prefer storing the parameter pre-transposed and calling
    projection_layer_wt directly: the transpose here is a full HBM
    read+write of the weight on every call.
    """
    return projection_layer_wt(x, jnp.transpose(weight), bias, **kwargs)


# ----------------------------------------------------------------------------
# Self-test
# ----------------------------------------------------------------------------

if __name__ == "__main__":
    d_model = 64
    vocab_size = 128
    batch, seq = 2, 8

    key = jax.random.PRNGKey(0)
    kx, kw, kb, kw2, kb2 = jax.random.split(key, 5)

    x = jax.random.normal(kx, (batch, seq, d_model), dtype=jnp.float32)

    # nn.Linear default init: U(-1/sqrt(fan_in), 1/sqrt(fan_in))
    bound = 1.0 / math.sqrt(d_model)
    weight = jax.random.uniform(kw, (vocab_size, d_model),
                                minval=-bound, maxval=bound, dtype=jnp.float32)
    bias = jax.random.uniform(kb, (vocab_size,),
                              minval=-bound, maxval=bound, dtype=jnp.float32)

    # Pre-transposed parameter (done once, not per call).
    weight_t = jnp.transpose(weight)                    # [D, V]

    def ref_logsoftmax(xx, w, b):
        logits = jnp.dot(xx, w.T) + b
        return jax.nn.log_softmax(logits, axis=-1)

    # --- Path 1: VMEM-resident weight (default for small problems) ----------
    out = jax.block_until_ready(projection_layer_wt(x, weight_t, bias))
    ref = ref_logsoftmax(x, weight, bias)
    assert out.shape == (batch, seq, vocab_size)
    # bf16 operands on the MXU -> relaxed tolerance vs. the f32 reference.
    err = float(jnp.max(jnp.abs(out - ref)))
    assert err < 5e-2, f"resident path error too large: {err}"
    prob_sum = jnp.sum(jnp.exp(out), axis=-1)
    assert bool(jnp.allclose(prob_sum, 1.0, atol=1e-2)), "probs do not sum to 1"

    # --- Path 2: vocab-tiled online-logsumexp (forced, small shapes) --------
    vocab2 = 384   # 3 vocab tiles of 128
    weight2 = jax.random.uniform(kw2, (vocab2, d_model),
                                 minval=-bound, maxval=bound, dtype=jnp.float32)
    bias2 = jax.random.uniform(kb2, (vocab2,),
                               minval=-bound, maxval=bound, dtype=jnp.float32)
    out2 = jax.block_until_ready(
        projection_layer_wt(x, jnp.transpose(weight2), bias2,
                            force_vocab_tiled=True, vocab_tile=128))
    ref2 = ref_logsoftmax(x, weight2, bias2)
    assert out2.shape == (batch, seq, vocab2)
    err2 = float(jnp.max(jnp.abs(out2 - ref2)))
    assert err2 < 5e-2, f"vocab-tiled path error too large: {err2}"

    print("KERNEL_OK")
</pallas_src>

<mosaic_0001>
module attributes {stable_mosaic.version = 11 : i64} {
  func.func @_proj_logsoftmax_kernel(%arg0: i32, %arg1: memref<16x64xbf16, #tpu.memory_space<vmem>>, %arg2: memref<64x128xbf16, #tpu.memory_space<vmem>>, %arg3: memref<1x128xf32, #tpu.memory_space<vmem>>, %arg4: memref<16x128xf32, #tpu.memory_space<vmem>>) attributes {dimension_semantics = [#tpu.dimension_semantics<parallel>], iteration_bounds = array<i64: 1>, scalar_prefetch = 0 : i64, scratch_operands = 0 : i64, tpu.core_type = #tpu.core_type<tc>, window_params = [{transform_indices = @transform_0, window_bounds = array<i64: 16, 64>}, {pipeline_mode = #tpu.pipeline_mode<synchronous>, transform_indices = @transform_1, window_bounds = array<i64: 64, 128>}, {pipeline_mode = #tpu.pipeline_mode<synchronous>, transform_indices = @transform_2, window_bounds = array<i64: 1, 128>}, {transform_indices = @transform_3, window_bounds = array<i64: 16, 128>}]} {
    %c0 = arith.constant 0 : index
    %c0_0 = arith.constant 0 : index
    %0 = vector.load %arg1[%c0, %c0_0] : memref<16x64xbf16, #tpu.memory_space<vmem>>, vector<16x64xbf16>
    %c0_1 = arith.constant 0 : index
    %c0_2 = arith.constant 0 : index
    %1 = vector.load %arg2[%c0_1, %c0_2] : memref<64x128xbf16, #tpu.memory_space<vmem>>, vector<64x128xbf16>
    %cst = arith.constant dense<0.000000e+00> : vector<16x128xf32>
    %2 = tpu.matmul %0, %1, %cst {dimension_numbers = #tpu.dot_dimension_numbers<[1], [0], [0], [1], [0, 0, 1, 1], [], []>} : vector<16x64xbf16>, vector<64x128xbf16>, vector<16x128xf32> -> vector<16x128xf32>
    %c0_3 = arith.constant 0 : index
    %c0_4 = arith.constant 0 : index
    %3 = vector.load %arg3[%c0_3, %c0_4] : memref<1x128xf32, #tpu.memory_space<vmem>>, vector<1x128xf32>
    %4 = vector.broadcast %3 : vector<1x128xf32> to vector<16x128xf32>
    %5 = arith.addf %2, %4 : vector<16x128xf32>
    %cst_5 = arith.constant dense<0xFF800000> : vector<16xf32>
    %6 = vector.multi_reduction <maximumf>, %5, %cst_5 [1] : vector<16x128xf32> to vector<16xf32>
    %7 = vector.shape_cast %6 : vector<16xf32> to vector<16x1xf32>
    %8 = vector.broadcast %7 : vector<16x1xf32> to vector<16x128xf32>
    %9 = arith.subf %5, %8 : vector<16x128xf32>
    %10 = math.exp %9 : vector<16x128xf32>
    %cst_6 = arith.constant dense<0.000000e+00> : vector<16xf32>
    %11 = vector.multi_reduction <add>, %10, %cst_6 [1] : vector<16x128xf32> to vector<16xf32>
    %12 = vector.shape_cast %11 : vector<16xf32> to vector<16x1xf32>
    %13 = math.log %12 : vector<16x1xf32>
    %14 = vector.broadcast %13 : vector<16x1xf32> to vector<16x128xf32>
    %15 = arith.subf %9, %14 : vector<16x128xf32>
    %c0_7 = arith.constant 0 : index
    %c0_8 = arith.constant 0 : index
    %16 = vector.load %arg4[%c0_7, %c0_8] : memref<16x128xf32, #tpu.memory_space<vmem>>, vector<16x128xf32>
    tpu.vector_store %arg4[%c0_7, %c0_8], %15 {strides = array<i32>} : memref<16x128xf32, #tpu.memory_space<vmem>>, vector<16x128xf32>,
    return
  }
  func.func @transform_0(%arg0: i32) -> (i32, i32) {
    %c0_i32 = arith.constant 0 : i32
    %c0_i32_0 = arith.constant 0 : i32
    return %arg0, %c0_i32 : i32, i32
  }
  func.func @transform_1(%arg0: i32) -> (i32, i32) {
    %c0_i32 = arith.constant 0 : i32
    %c0_i32_0 = arith.constant 0 : i32
    %c0_i32_1 = arith.constant 0 : i32
    return %c0_i32, %c0_i32_0 : i32, i32
  }
  func.func @transform_2(%arg0: i32) -> (i32, i32) {
    %c0_i32 = arith.constant 0 : i32
    %c0_i32_0 = arith.constant 0 : i32
    %c0_i32_1 = arith.constant 0 : i32
    return %c0_i32, %c0_i32_0 : i32, i32
  }
  func.func @transform_3(%arg0: i32) -> (i32, i32) {
    %c0_i32 = arith.constant 0 : i32
    %c0_i32_0 = arith.constant 0 : i32
    return %arg0, %c0_i32 : i32, i32
  }
}

module attributes {stable_mosaic.version = 11 : i64} {
  func.func @_proj_logsoftmax_kernel(%arg0: i32, %arg1: memref<16x64xbf16, #tpu.memory_space<vmem>>, %arg2: memref<64x128xbf16, #tpu.memory_space<vmem>>, %arg3: memref<1x128xf32, #tpu.memory_space<vmem>>, %arg4: memref<16x128xf32, #tpu.memory_space<vmem>>) attributes {dimension_semantics = [#tpu.dimension_semantics<parallel>], iteration_bounds = array<i64: 1>, scalar_prefetch = 0 : i64, scratch_operands = 0 : i64, tpu.core_type = #tpu.core_type<tc>, window_params = [{transform_indices = @transform_0, window_bounds = array<i64: 16, 64>}, {pipeline_mode = #tpu.pipeline_mode<synchronous>, transform_indices = @transform_1, window_bounds = array<i64: 64, 128>}, {pipeline_mode = #tpu.pipeline_mode<synchronous>, transform_indices = @transform_2, window_bounds = array<i64: 1, 128>}, {transform_indices = @transform_3, window_bounds = array<i64: 16, 128>}]} {
    %c0 = arith.constant 0 : index
    %c0_0 = arith.constant 0 : index
    %0 = vector.load %arg1[%c0, %c0_0] : memref<16x64xbf16, #tpu.memory_space<vmem>>, vector<16x64xbf16>
    %c0_1 = arith.constant 0 : index
    %c0_2 = arith.constant 0 : index
    %1 = vector.load %arg2[%c0_1, %c0_2] : memref<64x128xbf16, #tpu.memory_space<vmem>>, vector<64x128xbf16>
    %cst = arith.constant dense<0.000000e+00> : vector<16x128xf32>
    %2 = tpu.matmul %0, %1, %cst {dimension_numbers = #tpu.dot_dimension_numbers<[1], [0], [0], [1], [0, 0, 1, 1], [], []>} : vector<16x64xbf16>, vector<64x128xbf16>, vector<16x128xf32> -> vector<16x128xf32>
    %c0_3 = arith.constant 0 : index
    %c0_4 = arith.constant 0 : index
    %3 = vector.load %arg3[%c0_3, %c0_4] : memref<1x128xf32, #tpu.memory_space<vmem>>, vector<1x128xf32>
    %4 = vector.broadcast %3 : vector<1x128xf32> to vector<16x128xf32>
    %5 = arith.addf %2, %4 : vector<16x128xf32>
    %cst_5 = arith.constant dense<0xFF800000> : vector<16xf32>
    %6 = vector.multi_reduction <maximumf>, %5, %cst_5 [1] : vector<16x128xf32> to vector<16xf32>
    %7 = vector.shape_cast %6 : vector<16xf32> to vector<16x1xf32>
    %8 = vector.broadcast %7 : vector<16x1xf32> to vector<16x128xf32>
    %9 = arith.subf %5, %8 : vector<16x128xf32>
    %10 = math.exp %9 : vector<16x128xf32>
    %cst_6 = arith.constant dense<0.000000e+00> : vector<16xf32>
    %11 = vector.multi_reduction <add>, %10, %cst_6 [1] : vector<16x128xf32> to vector<16xf32>
    %12 = vector.shape_cast %11 : vector<16xf32> to vector<16x1xf32>
    %13 = math.log %12 : vector<16x1xf32>
    %14 = vector.broadcast %13 : vector<16x1xf32> to vector<16x128xf32>
    %15 = arith.subf %9, %14 : vector<16x128xf32>
    %c0_7 = arith.constant 0 : index
    %c0_8 = arith.constant 0 : index
    %16 = vector.load %arg4[%c0_7, %c0_8] : memref<16x128xf32, #tpu.memory_space<vmem>>, vector<16x128xf32>
    tpu.vector_store %arg4[%c0_7, %c0_8], %15 {strides = array<i32>} : memref<16x128xf32, #tpu.memory_space<vmem>>, vector<16x128xf32>,
    return
  }
  func.func @transform_0(%arg0: i32) -> (i32, i32) {
    %c0_i32 = arith.constant 0 : i32
    %c0_i32_0 = arith.constant 0 : i32
    return %arg0, %c0_i32 : i32, i32
  }
  func.func @transform_1(%arg0: i32) -> (i32, i32) {
    %c0_i32 = arith.constant 0 : i32
    %c0_i32_0 = arith.constant 0 : i32
    %c0_i32_1 = arith.constant 0 : i32
    return %c0_i32, %c0_i32_0 : i32, i32
  }
  func.func @transform_2(%arg0: i32) -> (i32, i32) {
    %c0_i32 = arith.constant 0 : i32
    %c0_i32_0 = arith.constant 0 : i32
    %c0_i32_1 = arith.constant 0 : i32
    return %c0_i32, %c0_i32_0 : i32, i32
  }
  func.func @transform_3(%arg0: i32) -> (i32, i32) {
    %c0_i32 = arith.constant 0 : i32
    %c0_i32_0 = arith.constant 0 : i32
    return %arg0, %c0_i32 : i32, i32
  }
}

</mosaic_0001>

<llo_original>
// kernel: tpu_custom_call.1
$region0: #{tpu_custom_call.1}
  #allocation0 [shape = 'u32[]', space=smem, size = 0x4, offset = 0x4, fixed_abs, tag = 'smem constant byte address 0x4 - core index']
  #allocation1 [shape = 'u32[144,128]{1,0:T(1,128)}', space=vmem, size = 0x12000, scoped, tag = 'internal scratch']
  %s0 = inlined_call_operand.hbm [shape: bf16[16,64], index: 0, kind: input, shape index: {}]
  %s1 = inlined_call_operand.hbm [shape: bf16[64,128], index: 1, kind: input, shape index: {}]
  %s2 = inlined_call_operand.vmem [shape: f32[1,128], index: 2, kind: input, shape index: {}]
  %s3 = inlined_call_operand.hbm [shape: f32[16,128], index: 3, kind: output, shape index: {}]
  %s4 = sld [smem:[#allocation0]]
  $region30: #{tpu_custom_call.1} parent=0
    _
  %s6 = ssub.s32 1, %s4
  %s7 = scalar_select 0, %s6, %s4
  $region1: #{tpu_custom_call.1} parent=0
    #allocation2 [shape = 'u8[4096]{0}', space=vmem, size = 0x1000, scoped, tag = 'input window, operand 0, single buffered']
    #allocation3 [shape = 's32[1]{0}', space=sflag, size = 0x4, scoped, tag = 'scoped memory for tpu_custom_call.1']
    #allocation4 [shape = 's32[1]{0}', space=sflag, size = 0x4, scoped, tag = 'scoped memory for tpu_custom_call.1']
    #allocation5 [shape = 'u8[16384]{0}', space=vmem, size = 0x4000, scoped, tag = 'input window, operand 1, single buffered']
    #allocation6 [shape = 's32[1]{0}', space=sflag, size = 0x4, scoped, tag = 'scoped memory for tpu_custom_call.1']
    #allocation7 [shape = 'u8[8192]{0}', space=vmem, size = 0x2000, scoped, tag = 'output window, operand 0, single buffered']
    %8 = vsyncpa [#allocation3], 0
    %9 = vsyncpa [#allocation6], 0
    %10 = vsyncpa [#allocation4], 0
    // Predicated region
    $region2: #{tpu_custom_call.1} parent=1 // pred_check
      _
    $region3: #{tpu_custom_call.1} parent=1 // pred_check_branch
      %12 = sbr.rel (0) target = $region5
    $region4: #{tpu_custom_call.1} parent=1 // pred_region
      %s14 = ssub.s32 128, 128
      %15 = vsyncadd [#allocation3], %s14
      %s16 = sshll.u32 [#allocation2], 4
      %s17 = int_to_ptr.vmem [resolvable:$true] %s16
      %22 = dma.hbm_to_vmem [thread:$0]  %s0, 128, %s17, [#allocation3], 64, 64, 4
    $region5: #{tpu_custom_call.1} parent=1 // pred_fallthru
      _
    // Predicated region
    $region6: #{tpu_custom_call.1} parent=1 // pred_check
      _
    $region7: #{tpu_custom_call.1} parent=1 // pred_check_branch
      %24 = sbr.rel (0) target = $region9
    $region8: #{tpu_custom_call.1} parent=1 // pred_region
      %s26 = ssub.s32 512, 512
      %27 = vsyncadd [#allocation6], %s26
      %s28 = sshll.u32 [#allocation5], 4
      %s29 = int_to_ptr.vmem [resolvable:$true] %s28
      %34 = dma.hbm_to_vmem [thread:$0]  %s1, 512, %s29, [#allocation6], 64, 64, 4
    $region9: #{tpu_custom_call.1} parent=1 // pred_fallthru
      _
    // Predicated region
    $region10: #{tpu_custom_call.1} parent=1 // pred_check
      _
    $region11: #{tpu_custom_call.1} parent=1 // pred_check_branch
      %36 = sbr.rel (0) target = $region13
    $region12: #{tpu_custom_call.1} parent=1 // pred_region
      _
    $region13: #{tpu_custom_call.1} parent=1 // pred_fallthru
      _
    // Predicated region
    $region14: #{tpu_custom_call.1} parent=1 // pred_check
      _
    $region15: #{tpu_custom_call.1} parent=1 // pred_check_branch
      %38 = sbr.rel (0) target = $region17
    $region16: #{tpu_custom_call.1} parent=1 // pred_region
      %39 = dma.done [#allocation3], 128
    $region17: #{tpu_custom_call.1} parent=1 // pred_fallthru
      _
    // Predicated region
    $region18: #{tpu_custom_call.1} parent=1 // pred_check
      _
    $region19: #{tpu_custom_call.1} parent=1 // pred_check_branch
      %41 = sbr.rel (0) target = $region21
    $region20: #{tpu_custom_call.1} parent=1 // pred_region
      %42 = dma.done [#allocation6], 512
    $region21: #{tpu_custom_call.1} parent=1 // pred_fallthru
      _
    %v44 = vld [vmem:[#allocation2] sm:$0xf]
    %v45 = vld [vmem:[#allocation2 + $0x4] sm:$0xf]
    %v46 = vld [vmem:[#allocation5] sm:$0xf]
    %v47 = vld [vmem:[#allocation5 + $0x4] sm:$0xf]
    %v48 = vld [vmem:[#allocation5 + $0x8] sm:$0xf]
    %v49 = vld [vmem:[#allocation5 + $0xc] sm:$0xf]
    %v50 = vld [vmem:[#allocation5 + $0x10] sm:$0xf]
    %v51 = vld [vmem:[#allocation5 + $0x14] sm:$0xf]
    %v52 = vld [vmem:[#allocation5 + $0x18] sm:$0xf]
    %v53 = vld [vmem:[#allocation5 + $0x1c] sm:$0xf]
    %v54 = vld [vmem:[%s2] sm:$0x1]
    %v56 = vlaneseq
    %v57 = vshrl.u32 %v56, 7
    %v58 = vsub.s32 0, %v57
    %v59 = vrot.slane %v54, %v58
    %v63 = vunpack.c.l.b16 %v44
    %v64 = vunpack.c.l.b16 %v45
    %v65 = vpack.c.b16 %v64, %v63
    %v74 = vunpack.c.l.b16 %v46
    %v75 = vunpack.c.l.b16 %v47
    %v76 = vunpack.c.l.b16 %v48
    %v77 = vunpack.c.l.b16 %v49
    %v78 = vunpack.c.l.b16 %v50
    %v79 = vunpack.c.l.b16 %v51
    %v80 = vunpack.c.l.b16 %v52
    %v81 = vunpack.c.l.b16 %v53
    %v82 = vpack.c.b16 %v75, %v74
    %v83 = vpack.c.b16 %v77, %v76
    %v84 = vpack.c.b16 %v79, %v78
    %v85 = vpack.c.b16 %v81, %v80
    %vm90 = vcmask 523264
    %v92 = vsel %vm90, %v65, 0
    %94 = vmatprep.subr.bf16.mxu0 0
    %95 = vmatpush1.bf16.msra.mxu0 %v82
    %96 = vmatprep.subr.bf16.mxu0 0
    %97 = vmatpush1.bf16.msra.mxu0 %v83
    %98 = vmatprep.subr.bf16.mxu0 0
    %99 = vmatpush1.bf16.msra.mxu0 %v84
    %100 = vmatprep.subr.bf16.mxu0 0
    %101 = vmatpush1.bf16.msra.mxu0 %v85
    %102 = vmatprep.subr.bf16.mxu0 0
    %103 = vmatpush1.bf16.msra.mxu0 0
    %104 = vmatprep.subr.bf16.mxu0 0
    %105 = vmatpush1.bf16.msra.mxu0 0
    %106 = vmatprep.subr.bf16.mxu0 0
    %107 = vmatpush1.bf16.msra.mxu0 0
    %108 = vmatprep.subr.bf16.mxu0 0
    %109 = vmatpush1.bf16.msra.mxu0 0
    %110 = vmatprep.subr.bf16.mxu0 0
    %111 = vmatpush1.bf16.msra.mxu0 0
    %112 = vmatprep.subr.bf16.mxu0 0
    %113 = vmatpush1.bf16.msra.mxu0 0
    %114 = vmatprep.subr.bf16.mxu0 0
    %115 = vmatpush1.bf16.msra.mxu0 0
    %116 = vmatprep.subr.bf16.mxu0 0
    %117 = vmatpush1.bf16.msra.mxu0 0
    %118 = vmatprep.subr.bf16.mxu0 0
    %119 = vmatpush1.bf16.msra.mxu0 0
    %120 = vmatprep.subr.bf16.mxu0 0
    %121 = vmatpush1.bf16.msra.mxu0 0
    %122 = vmatprep.subr.bf16.mxu0 0
    %123 = vmatpush1.bf16.msra.mxu0 0
    %124 = vmatprep.subr.bf16.mxu0 0
    %125 = vmatpush1.bf16.msra.mxu0 0
    %126 = vmatprep.mubr.bf16.mxu0 0
    %127 = vmatmul.mubr.bf16.gmra.mrb[0].mxu0 %v92
    %v128 = vpop.f32.mrb[0].mxu0
    %v129 = vadd.f32 %v59, %v128
    %v130 = vpop.f32.mrb[0].mxu0
    %v131 = vpop.f32.mrb[0].mxu0
    %v132 = vadd.f32 %v59, %v131
    %v133 = vpop.f32.mrb[0].mxu0
    %134 = vdwg.mxu0
    %135 = vmax.xlane.f32.xlu0 %v129
    %v136 = vpop.xlane.xlu0 %135
    %137 = vmax.xlane.f32.xlu0 %v132
    %v138 = vpop.xlane.xlu0 %137
    %v139 = vsub.f32 %v129, %v136
    %v140 = vsub.f32 %v132, %v138
    %v141 = vmul.f32 %v139, 1.442695
    %v142 = vpow.pop %v141
    %v143 = vmul.f32 %v140, 1.442695
    %v144 = vpow.pop %v143
    %145 = vadd.xlane.f32.xlu0 %v142
    %v146 = vpop.xlane.xlu0 %145
    %147 = vadd.xlane.f32.xlu0 %v144
    %v148 = vpop.xlane.xlu0 %147
    %v149 = vlog2.pop %v146
    %v150 = vmul.f32 %v149, 0.6931472
    %v151 = vlog2.pop %v148
    %v152 = vmul.f32 %v151, 0.6931472
    %v153 = vsub.f32 %v139, %v150
    %v154 = vsub.f32 %v140, %v152
    %155 = vst [vmem:[#allocation7] sm:$0xff] %v153
    %156 = vst [vmem:[#allocation7 + $0x8] sm:$0xff] %v154
    // Predicated region
    $region22: #{tpu_custom_call.1} parent=1 // pred_check
      _
    $region23: #{tpu_custom_call.1} parent=1 // pred_check_branch
      %158 = sbr.rel (0) target = $region25
    $region24: #{tpu_custom_call.1} parent=1 // pred_region
      %s160 = ssub.s32 256, 256
      %161 = vsyncadd [#allocation4], %s160
      %s162 = sshll.u32 [#allocation7], 4
      %s163 = int_to_ptr.vmem [resolvable:$true] %s162
      %168 = dma.vmem_to_hbm [thread:$0]  %s163, 256, %s3, [#allocation4], 128, 128, 8
    $region25: #{tpu_custom_call.1} parent=1 // pred_fallthru
      _
    // Predicated region
    $region26: #{tpu_custom_call.1} parent=1 // pred_check
      _
    $region27: #{tpu_custom_call.1} parent=1 // pred_check_branch
      %170 = sbr.rel (0) target = $region29
    $region28: #{tpu_custom_call.1} parent=1 // pred_region
      %171 = dma.done [#allocation4], 256
    $region29: #{tpu_custom_call.1} parent=1 // pred_fallthru
      _
    %172 = vsyncpa [#allocation3], 1
    %173 = vsyncpa [#allocation6], 1
    %174 = vsyncpa [#allocation4], 1

// kernel: tpu_custom_call.1
$region0: #{tpu_custom_call.1}
  #allocation0 [shape = 'u32[]', space=smem, size = 0x4, offset = 0x4, fixed_abs, tag = 'smem constant byte address 0x4 - core index']
  #allocation1 [shape = 'u32[144,128]{1,0:T(1,128)}', space=vmem, size = 0x12000, scoped, tag = 'internal scratch']
  %s0 = inlined_call_operand.hbm [shape: bf16[16,64], index: 0, kind: input, shape index: {}]
  %s1 = inlined_call_operand.hbm [shape: bf16[64,128], index: 1, kind: input, shape index: {}]
  %s2 = inlined_call_operand.vmem [shape: f32[1,128], index: 2, kind: input, shape index: {}]
  %s3 = inlined_call_operand.hbm [shape: f32[16,128], index: 3, kind: output, shape index: {}]
  %s4 = sld [smem:[#allocation0]]
  $region30: #{tpu_custom_call.1} parent=0
    _
  %s6 = ssub.s32 1, %s4
  %s7 = scalar_select 0, %s6, %s4
  $region1: #{tpu_custom_call.1} parent=0
    #allocation2 [shape = 'u8[4096]{0}', space=vmem, size = 0x1000, scoped, tag = 'input window, operand 0, single buffered']
    #allocation3 [shape = 's32[1]{0}', space=sflag, size = 0x4, scoped, tag = 'scoped memory for tpu_custom_call.1']
    #allocation4 [shape = 's32[1]{0}', space=sflag, size = 0x4, scoped, tag = 'scoped memory for tpu_custom_call.1']
    #allocation5 [shape = 'u8[16384]{0}', space=vmem, size = 0x4000, scoped, tag = 'input window, operand 1, single buffered']
    #allocation6 [shape = 's32[1]{0}', space=sflag, size = 0x4, scoped, tag = 'scoped memory for tpu_custom_call.1']
    #allocation7 [shape = 'u8[8192]{0}', space=vmem, size = 0x2000, scoped, tag = 'output window, operand 0, single buffered']
    %8 = vsyncpa [#allocation3], 0
    %9 = vsyncpa [#allocation6], 0
    %10 = vsyncpa [#allocation4], 0
    // Predicated region
    $region2: #{tpu_custom_call.1} parent=1 // pred_check
      _
    $region3: #{tpu_custom_call.1} parent=1 // pred_check_branch
      %12 = sbr.rel (0) target = $region5
    $region4: #{tpu_custom_call.1} parent=1 // pred_region
      %s14 = ssub.s32 128, 128
      %15 = vsyncadd [#allocation3], %s14
      %s16 = sshll.u32 [#allocation2], 4
      %s17 = int_to_ptr.vmem [resolvable:$true] %s16
      %22 = dma.hbm_to_vmem [thread:$0]  %s0, 128, %s17, [#allocation3], 64, 64, 4
    $region5: #{tpu_custom_call.1} parent=1 // pred_fallthru
      _
    // Predicated region
    $region6: #{tpu_custom_call.1} parent=1 // pred_check
      _
    $region7: #{tpu_custom_call.1} parent=1 // pred_check_branch
      %24 = sbr.rel (0) target = $region9
    $region8: #{tpu_custom_call.1} parent=1 // pred_region
      %s26 = ssub.s32 512, 512
      %27 = vsyncadd [#allocation6], %s26
      %s28 = sshll.u32 [#allocation5], 4
      %s29 = int_to_ptr.vmem [resolvable:$true] %s28
      %34 = dma.hbm_to_vmem [thread:$0]  %s1, 512, %s29, [#allocation6], 64, 64, 4
    $region9: #{tpu_custom_call.1} parent=1 // pred_fallthru
      _
    // Predicated region
    $region10: #{tpu_custom_call.1} parent=1 // pred_check
      _
    $region11: #{tpu_custom_call.1} parent=1 // pred_check_branch
      %36 = sbr.rel (0) target = $region13
    $region12: #{tpu_custom_call.1} parent=1 // pred_region
      _
    $region13: #{tpu_custom_call.1} parent=1 // pred_fallthru
      _
    // Predicated region
    $region14: #{tpu_custom_call.1} parent=1 // pred_check
      _
    $region15: #{tpu_custom_call.1} parent=1 // pred_check_branch
      %38 = sbr.rel (0) target = $region17
    $region16: #{tpu_custom_call.1} parent=1 // pred_region
      %39 = dma.done [#allocation3], 128
    $region17: #{tpu_custom_call.1} parent=1 // pred_fallthru
      _
    // Predicated region
    $region18: #{tpu_custom_call.1} parent=1 // pred_check
      _
    $region19: #{tpu_custom_call.1} parent=1 // pred_check_branch
      %41 = sbr.rel (0) target = $region21
    $region20: #{tpu_custom_call.1} parent=1 // pred_region
      %42 = dma.done [#allocation6], 512
    $region21: #{tpu_custom_call.1} parent=1 // pred_fallthru
      _
    %v44 = vld [vmem:[#allocation2] sm:$0xf]
    %v45 = vld [vmem:[#allocation2 + $0x4] sm:$0xf]
    %v46 = vld [vmem:[#allocation5] sm:$0xf]
    %v47 = vld [vmem:[#allocation5 + $0x4] sm:$0xf]
    %v48 = vld [vmem:[#allocation5 + $0x8] sm:$0xf]
    %v49 = vld [vmem:[#allocation5 + $0xc] sm:$0xf]
    %v50 = vld [vmem:[#allocation5 + $0x10] sm:$0xf]
    %v51 = vld [vmem:[#allocation5 + $0x14] sm:$0xf]
    %v52 = vld [vmem:[#allocation5 + $0x18] sm:$0xf]
    %v53 = vld [vmem:[#allocation5 + $0x1c] sm:$0xf]
    %v54 = vld [vmem:[%s2] sm:$0x1]
    %v56 = vlaneseq
    %v57 = vshrl.u32 %v56, 7
    %v58 = vsub.s32 0, %v57
    %v59 = vrot.slane %v54, %v58
    %v63 = vunpack.c.l.b16 %v44
    %v64 = vunpack.c.l.b16 %v45
    %v65 = vpack.c.b16 %v64, %v63
    %v74 = vunpack.c.l.b16 %v46
    %v75 = vunpack.c.l.b16 %v47
    %v76 = vunpack.c.l.b16 %v48
    %v77 = vunpack.c.l.b16 %v49
    %v78 = vunpack.c.l.b16 %v50
    %v79 = vunpack.c.l.b16 %v51
    %v80 = vunpack.c.l.b16 %v52
    %v81 = vunpack.c.l.b16 %v53
    %v82 = vpack.c.b16 %v75, %v74
    %v83 = vpack.c.b16 %v77, %v76
    %v84 = vpack.c.b16 %v79, %v78
    %v85 = vpack.c.b16 %v81, %v80
    %vm90 = vcmask 523264
    %v92 = vsel %vm90, %v65, 0
    %94 = vmatprep.subr.bf16.mxu0 0
    %95 = vmatpush1.bf16.msra.mxu0 %v82
    %96 = vmatprep.subr.bf16.mxu0 0
    %97 = vmatpush1.bf16.msra.mxu0 %v83
    %98 = vmatprep.subr.bf16.mxu0 0
    %99 = vmatpush1.bf16.msra.mxu0 %v84
    %100 = vmatprep.subr.bf16.mxu0 0
    %101 = vmatpush1.bf16.msra.mxu0 %v85
    %102 = vmatprep.subr.bf16.mxu0 0
    %103 = vmatpush1.bf16.msra.mxu0 0
    %104 = vmatprep.subr.bf16.mxu0 0
    %105 = vmatpush1.bf16.msra.mxu0 0
    %106 = vmatprep.subr.bf16.mxu0 0
    %107 = vmatpush1.bf16.msra.mxu0 0
    %108 = vmatprep.subr.bf16.mxu0 0
    %109 = vmatpush1.bf16.msra.mxu0 0
    %110 = vmatprep.subr.bf16.mxu0 0
    %111 = vmatpush1.bf16.msra.mxu0 0
    %112 = vmatprep.subr.bf16.mxu0 0
    %113 = vmatpush1.bf16.msra.mxu0 0
    %114 = vmatprep.subr.bf16.mxu0 0
    %115 = vmatpush1.bf16.msra.mxu0 0
    %116 = vmatprep.subr.bf16.mxu0 0
    %117 = vmatpush1.bf16.msra.mxu0 0
    %118 = vmatprep.subr.bf16.mxu0 0
    %119 = vmatpush1.bf16.msra.mxu0 0
    %120 = vmatprep.subr.bf16.mxu0 0
    %121 = vmatpush1.bf16.msra.mxu0 0
    %122 = vmatprep.subr.bf16.mxu0 0
    %123 = vmatpush1.bf16.msra.mxu0 0
    %124 = vmatprep.subr.bf16.mxu0 0
    %125 = vmatpush1.bf16.msra.mxu0 0
    %126 = vmatprep.mubr.bf16.mxu0 0
    %127 = vmatmul.mubr.bf16.gmra.mrb[0].mxu0 %v92
    %v128 = vpop.f32.mrb[0].mxu0
    %v129 = vadd.f32 %v59, %v128
    %v130 = vpop.f32.mrb[0].mxu0
    %v131 = vpop.f32.mrb[0].mxu0
    %v132 = vadd.f32 %v59, %v131
    %v133 = vpop.f32.mrb[0].mxu0
    %134 = vdwg.mxu0
    %135 = vmax.xlane.f32.xlu0 %v129
    %v136 = vpop.xlane.xlu0 %135
    %137 = vmax.xlane.f32.xlu0 %v132
    %v138 = vpop.xlane.xlu0 %137
    %v139 = vsub.f32 %v129, %v136
    %v140 = vsub.f32 %v132, %v138
    %v141 = vmul.f32 %v139, 1.442695
    %v142 = vpow.pop %v141
    %v143 = vmul.f32 %v140, 1.442695
    %v144 = vpow.pop %v143
    %145 = vadd.xlane.f32.xlu0 %v142
    %v146 = vpop.xlane.xlu0 %145
    %147 = vadd.xlane.f32.xlu0 %v144
    %v148 = vpop.xlane.xlu0 %147
    %v149 = vlog2.pop %v146
    %v150 = vmul.f32 %v149, 0.6931472
    %v151 = vlog2.pop %v148
    %v152 = vmul.f32 %v151, 0.6931472
    %v153 = vsub.f32 %v139, %v150
    %v154 = vsub.f32 %v140, %v152
    %155 = vst [vmem:[#allocation7] sm:$0xff] %v153
    %156 = vst [vmem:[#allocation7 + $0x8] sm:$0xff] %v154
    // Predicated region
    $region22: #{tpu_custom_call.1} parent=1 // pred_check
      _
    $region23: #{tpu_custom_call.1} parent=1 // pred_check_branch
      %158 = sbr.rel (0) target = $region25
    $region24: #{tpu_custom_call.1} parent=1 // pred_region
      %s160 = ssub.s32 256, 256
      %161 = vsyncadd [#allocation4], %s160
      %s162 = sshll.u32 [#allocation7], 4
      %s163 = int_to_ptr.vmem [resolvable:$true] %s162
      %168 = dma.vmem_to_hbm [thread:$0]  %s163, 256, %s3, [#allocation4], 128, 128, 8
    $region25: #{tpu_custom_call.1} parent=1 // pred_fallthru
      _
    // Predicated region
    $region26: #{tpu_custom_call.1} parent=1 // pred_check
      _
    $region27: #{tpu_custom_call.1} parent=1 // pred_check_branch
      %170 = sbr.rel (0) target = $region29
    $region28: #{tpu_custom_call.1} parent=1 // pred_region
      %171 = dma.done [#allocation4], 256
    $region29: #{tpu_custom_call.1} parent=1 // pred_fallthru
      _
    %172 = vsyncpa [#allocation3], 1
    %173 = vsyncpa [#allocation6], 1
    %174 = vsyncpa [#allocation4], 1

</llo_original>
